<compile_context>
chip_gen: v6e
topology: v6e:2x2x1
jax: 0.10.0
libtpu: 0.0.40
codegen_flags: <defaults>
</compile_context>

<pallas_src>
import functools

import jax
import jax.numpy as jnp
from jax.experimental import pallas as pl
from jax.experimental.pallas import tpu as pltpu


def _round_up(x, m):
    return (x + m - 1) // m * m


# --------------------------------------------------------------------------
# Static layout of the packed parameter slab: one (rows, 128) f32 tile.
# All weights are stored pre-transposed (feature-major) so the kernel never
# transposes anything.
# --------------------------------------------------------------------------
def slab_layout(D, H, M):
    assert 8 + 2 * D <= 128, "encoder/decoder feature block must fit in 128 lanes"
    assert H + 1 <= 128 and M <= 128
    ra = _round_up(max(D, H), 8)      # start of decoder-head block
    rb = ra + 8                       # start of folding-grid block
    rows = rb + 8
    lay = {
        # name : (row0, row1, col0, col1)
        "w1T":   (0, D, 0, 3),                     # enc_w1.T  (D, 3)
        "b1":    (0, D, 3, 4),                     # enc_b1.T  (D, 1)
        "w2T":   (0, D, 4, 4 + D),                 # enc_w2.T  (D, D)
        "b2":    (0, D, 4 + D, 5 + D),             # enc_b2.T  (D, 1)
        "wfT":   (0, H, 5 + D, 5 + 2 * D),         # dec_wf.T  (H, D)
        "db1":   (0, H, 5 + 2 * D, 6 + 2 * D),     # dec_b1.T  (H, 1)
        "wgT":   (0, H, 6 + 2 * D, 8 + 2 * D),     # dec_wg.T  (H, 2)
        "dw2T":  (ra, ra + 3, 0, H),               # dec_w2.T  (3, H)
        "db2":   (ra, ra + 3, H, H + 1),           # dec_b2.T  (3, 1)
        "gridT": (rb, rb + 2, 0, M),               # fold_grid.T (2, M)
    }
    return lay, rows


def pack_params(params, D, H, M):
    """One-time host-side packing of all weights into a single padded slab."""
    lay, rows = slab_layout(D, H, M)
    pieces = {
        "w1T": params["enc_w1"].T, "b1": params["enc_b1"].T,
        "w2T": params["enc_w2"].T, "b2": params["enc_b2"].T,
        "wfT": params["dec_wf"].T, "db1": params["dec_b1"].T,
        "wgT": params["dec_wg"].T,
        "dw2T": params["dec_w2"].T, "db2": params["dec_b2"].T,
        "gridT": params["fold_grid"].T,
    }
    slab = jnp.zeros((rows, 128), jnp.float32)
    for name, mat in pieces.items():
        r0, r1, c0, c1 = lay[name]
        slab = slab.at[r0:r1, c0:c1].set(mat.astype(jnp.float32))
    return slab, lay


# --------------------------------------------------------------------------
# Fused kernel: encoder (+max-pool) -> FoldingNet decoder -> Chamfer-L1 loss
#   xm_ref   : (3, B*Lk)   masked (kept) points, feature-major, batch-stacked
#   xyz_ref  : (B, N, 3)   full original clouds (Chamfer target)
#   slab_ref : (rows, 128) packed weights
#   out_ref  : (8, B*M)    rows 0:3 = pred (coord-major), [3, 0] = batch-mean loss
# --------------------------------------------------------------------------
def fused_masked_point_kernel(xm_ref, xyz_ref, slab_ref, out_ref, *, D, H, M, lay):
    B, N, _ = xyz_ref.shape
    Lk = xm_ref.shape[1] // B
    lanes = out_ref.shape[1]          # B*M

    def get(name):
        r0, r1, c0, c1 = lay[name]
        return slab_ref[r0:r1, c0:c1]          # static slice of the single weight slab

    # ---------------- encoder: shared MLP 3 -> D -> D (feature-major) --------
    xT = xm_ref[...]                                            # (3, B*Lk)
    w1T = get("w1T")                                            # (D, 3)
    # K=3 contraction as VPU broadcast FMAs (MXU would use <3% of its array).
    hT = (w1T[:, 0:1] * xT[0:1, :] + w1T[:, 1:2] * xT[1:2, :]
          + w1T[:, 2:3] * xT[2:3, :] + get("b1"))               # (D, B*Lk)
    hT = jnp.maximum(hT, 0.0)
    fT = jnp.dot(get("w2T"), hT,
                 preferred_element_type=jnp.float32) + get("b2")  # (D, B*Lk)

    # ---------------- global feature: per-cloud max-pool (torch.max dim=-1) --
    gfeatT = jnp.concatenate(
        [jnp.max(fT[:, b * Lk:(b + 1) * Lk], axis=1, keepdims=True) for b in range(B)],
        axis=1)                                                 # (D, B)
    # batched projection: one (H, D) @ (D, B) matmul for the whole batch
    featT = jnp.dot(get("wfT"), gfeatT,
                    preferred_element_type=jnp.float32) + get("db1")  # (H, B)

    # ---------------- FoldingNet-style decoder (feature-major) ---------------
    gridT = get("gridT")                                        # (2, M)
    wgT = get("wgT")                                            # (H, 2)
    grid_termT = wgT[:, 0:1] * gridT[0:1, :] + wgT[:, 1:2] * gridT[1:2, :]   # (H, M) VPU
    h_allT = jnp.concatenate(
        [jnp.maximum(grid_termT + featT[:, b:b + 1], 0.0) for b in range(B)],
        axis=1)                                                 # (H, B*M) = (32, 128)
    # single lane-dense MXU matmul for the whole batch's prediction
    predT = (jnp.dot(get("dw2T"), h_allT, preferred_element_type=jnp.float32)
             + get("db2"))                                      # (3, B*M)

    # ---------------- Chamfer-L1(pred_b, xyz[b]), batch mean -----------------
    loss_acc = jnp.zeros((1, 1), jnp.float32)
    for b in range(B):                       # B tiny & static -> unrolled
        x_b = xyz_ref[b]                                        # (N, 3) point-major
        p_bT = predT[:, b * M:(b + 1) * M]                      # (3, M) coord-major
        d0 = x_b[:, 0:1] - p_bT[0:1, :]
        d1 = x_b[:, 1:2] - p_bT[1:2, :]
        d2 = x_b[:, 2:3] - p_bT[2:3, :]
        dist2 = d0 * d0 + d1 * d1 + d2 * d2                     # (N, M), no cancellation
        # sqrt is monotone: only sqrt the N + M minima of dist2
        min_x = jnp.sqrt(jnp.min(dist2, axis=1, keepdims=True))  # (N, 1)
        min_p = jnp.sqrt(jnp.min(dist2, axis=0, keepdims=True))  # (1, M)
        l_x = jnp.sum(min_x, axis=0, keepdims=True) * (1.0 / N)
        l_p = jnp.sum(min_p, axis=1, keepdims=True) * (1.0 / M)
        loss_acc = loss_acc + 0.5 * (l_x + l_p)
    loss_mean = loss_acc * (1.0 / B)

    # ---------------- single lane-dense (8, 128) store: pred + folded loss ---
    pad_rows = out_ref.shape[0] - 4
    out_ref[...] = jnp.concatenate(
        [predT,
         loss_mean + jnp.zeros((1, lanes), jnp.float32),        # loss in row 3
         jnp.zeros((pad_rows, lanes), jnp.float32)],
        axis=0)


def run_fused_masked_point(xyz_masked, xyz, slab, lay, D, H, M):
    B, _, _ = xyz.shape
    Lk = xyz_masked.shape[1]

    # feature-major kept points -> lane-dense encoder input (3, B*Lk)
    xm_T = xyz_masked.reshape(B * Lk, 3).T

    out = pl.pallas_call(
        functools.partial(fused_masked_point_kernel, D=D, H=H, M=M, lay=lay),
        out_shape=jax.ShapeDtypeStruct((8, B * M), jnp.float32),
        # no grid: one fused invocation, everything resident in VMEM
        in_specs=[pl.BlockSpec(memory_space=pltpu.MemorySpace.VMEM),
                  pl.BlockSpec(memory_space=pltpu.MemorySpace.VMEM),
                  pl.BlockSpec(memory_space=pltpu.MemorySpace.VMEM)],
        out_specs=pl.BlockSpec(memory_space=pltpu.MemorySpace.VMEM),
    )(xm_T, xyz, slab)

    loss = out[3, 0]
    pred = out[0:3, :].reshape(3, B, M).transpose(1, 2, 0)      # (B, M, 3)
    return loss, pred


# --------------------------------------------------------------------------
# Plain-JAX glue: random masking (argsort + gather, matches the torch version)
# --------------------------------------------------------------------------
def random_masking(key, xyz, mask_ratio):
    # TODO(synk): for production point-cloud sizes, feed ids_keep via
    # PrefetchScalarGridSpec + pl.Element row-gather instead of take_along_axis.
    B, L, _ = xyz.shape
    len_keep = int(L * (1.0 - mask_ratio))
    noise = jax.random.uniform(key, (B, L))
    ids_shuffle = jnp.argsort(noise, axis=1)
    ids_restore = jnp.argsort(ids_shuffle, axis=1)
    ids_keep = ids_shuffle[:, :len_keep]
    x_masked = jnp.take_along_axis(xyz, ids_keep[:, :, None], axis=1)  # (B, len_keep, 3)
    mask = jnp.ones((B, L), jnp.float32).at[:, :len_keep].set(0.0)
    mask = jnp.take_along_axis(mask, ids_restore, axis=1)
    return x_masked, None, mask, ids_restore, ids_keep


# --------------------------------------------------------------------------
# MaskedPoint forward: masking -> fused (encoder + max-pool + decoder + chamfer)
# --------------------------------------------------------------------------
def masked_point_forward(params_packed, xyz, mask_key, mask_ratio=0.75):
    slab, lay, D, H, M = params_packed
    xyz_masked, _, mask, ids_restore, ids_keep = random_masking(mask_key, xyz, mask_ratio)
    # TODO(synk): FoldingNet-style decoder regenerates the cloud from the global
    # feature; `mask` / `ids_restore` (used by mask-token decoders) are intentionally unused.
    loss, pred = run_fused_masked_point(xyz_masked, xyz, slab, lay, D, H, M)
    return loss, pred


def init_params(D=32, H=32, grid_side=8):
    keys = jax.random.split(jax.random.PRNGKey(42), 8)
    p = {
        "enc_w1": 0.1 * jax.random.normal(keys[0], (3, D), jnp.float32),
        "enc_b1": jnp.zeros((1, D), jnp.float32),
        "enc_w2": 0.1 * jax.random.normal(keys[1], (D, D), jnp.float32),
        "enc_b2": jnp.zeros((1, D), jnp.float32),
        "dec_wg": 0.1 * jax.random.normal(keys[2], (2, H), jnp.float32),
        "dec_wf": 0.1 * jax.random.normal(keys[3], (D, H), jnp.float32),
        "dec_b1": jnp.zeros((1, H), jnp.float32),
        "dec_w2": 0.1 * jax.random.normal(keys[4], (H, 3), jnp.float32),
        "dec_b2": jnp.zeros((1, 3), jnp.float32),
    }
    # fixed 2-D folding grid in [-0.5, 0.5]^2, M = grid_side**2 points
    lin = jnp.linspace(-0.5, 0.5, grid_side, dtype=jnp.float32)
    gx, gy = jnp.meshgrid(lin, lin, indexing="ij")
    p["fold_grid"] = jnp.stack([gx.ravel(), gy.ravel()], axis=-1)      # (M, 2)
    return p


if __name__ == "__main__":
    B, L = 2, 64               # batch, points per cloud
    D = H = 32
    grid_side = 8              # M = 64 decoded points per cloud -> B*M = 128 lanes
    mask_ratio = 0.75          # keep 16 of 64 points
    key = jax.random.PRNGKey(0)
    kx, km = jax.random.split(key)
    xyz = jax.random.uniform(kx, (B, L, 3), jnp.float32, -1.0, 1.0)

    params = init_params(D=D, H=H, grid_side=grid_side)
    M = params["fold_grid"].shape[0]
    slab, lay = pack_params(params, D, H, M)          # one-time (48, 128) weight slab

    fwd = functools.partial(masked_point_forward, mask_ratio=mask_ratio)
    loss, pred = fwd((slab, lay, D, H, M), xyz, km)
    jax.block_until_ready((loss, pred))

    assert pred.shape == (B, M, 3)
    assert bool(jnp.isfinite(loss))
    print("KERNEL_OK")
</pallas_src>

<mosaic_0001>
module attributes {stable_mosaic.version = 11 : i64} {
  func.func @fused_masked_point_kernel(%arg0: memref<3x32xf32, #tpu.memory_space<vmem>>, %arg1: memref<2x64x3xf32, #tpu.memory_space<vmem>>, %arg2: memref<48x128xf32, #tpu.memory_space<vmem>>, %arg3: memref<8x128xf32, #tpu.memory_space<vmem>>) attributes {dimension_semantics = [], scalar_prefetch = 0 : i64, scratch_operands = 0 : i64, tpu.core_type = #tpu.core_type<tc>} {
    %c0 = arith.constant 0 : index
    %c0_0 = arith.constant 0 : index
    %0 = vector.load %arg0[%c0, %c0_0] : memref<3x32xf32, #tpu.memory_space<vmem>>, vector<3x32xf32>
    %c0_1 = arith.constant 0 : index
    %c0_2 = arith.constant 0 : index
    %1 = vector.load %arg2[%c0_1, %c0_2] : memref<48x128xf32, #tpu.memory_space<vmem>>, vector<32x3xf32>
    %2 = vector.extract_strided_slice %1 {offsets = [0, 0], sizes = [32, 1], strides = [1, 1]} : vector<32x3xf32> to vector<32x1xf32>
    %3 = vector.extract_strided_slice %0 {offsets = [0, 0], sizes = [1, 32], strides = [1, 1]} : vector<3x32xf32> to vector<1x32xf32>
    %4 = vector.broadcast %2 : vector<32x1xf32> to vector<32x32xf32>
    %5 = vector.broadcast %3 : vector<1x32xf32> to vector<32x32xf32>
    %6 = arith.mulf %4, %5 : vector<32x32xf32>
    %7 = vector.extract_strided_slice %1 {offsets = [0, 1], sizes = [32, 1], strides = [1, 1]} : vector<32x3xf32> to vector<32x1xf32>
    %8 = vector.extract_strided_slice %0 {offsets = [1, 0], sizes = [1, 32], strides = [1, 1]} : vector<3x32xf32> to vector<1x32xf32>
    %9 = vector.broadcast %7 : vector<32x1xf32> to vector<32x32xf32>
    %10 = vector.broadcast %8 : vector<1x32xf32> to vector<32x32xf32>
    %11 = arith.mulf %9, %10 : vector<32x32xf32>
    %12 = arith.addf %6, %11 : vector<32x32xf32>
    %13 = vector.extract_strided_slice %1 {offsets = [0, 2], sizes = [32, 1], strides = [1, 1]} : vector<32x3xf32> to vector<32x1xf32>
    %14 = vector.extract_strided_slice %0 {offsets = [2, 0], sizes = [1, 32], strides = [1, 1]} : vector<3x32xf32> to vector<1x32xf32>
    %15 = vector.broadcast %13 : vector<32x1xf32> to vector<32x32xf32>
    %16 = vector.broadcast %14 : vector<1x32xf32> to vector<32x32xf32>
    %17 = arith.mulf %15, %16 : vector<32x32xf32>
    %18 = arith.addf %12, %17 : vector<32x32xf32>
    %c0_3 = arith.constant 0 : index
    %c3 = arith.constant 3 : index
    %19 = vector.load %arg2[%c0_3, %c3] : memref<48x128xf32, #tpu.memory_space<vmem>>, vector<32x1xf32>
    %20 = vector.broadcast %19 : vector<32x1xf32> to vector<32x32xf32>
    %21 = arith.addf %18, %20 : vector<32x32xf32>
    %cst = arith.constant 0.000000e+00 : f32
    %22 = vector.broadcast %cst : f32 to vector<32x32xf32>
    %23 = arith.maximumf %21, %22 : vector<32x32xf32>
    %c0_4 = arith.constant 0 : index
    %c4 = arith.constant 4 : index
    %24 = vector.load %arg2[%c0_4, %c4] : memref<48x128xf32, #tpu.memory_space<vmem>>, vector<32x32xf32>
    %cst_5 = arith.constant dense<0.000000e+00> : vector<32x32xf32>
    %25 = tpu.matmul %24, %23, %cst_5 {dimension_numbers = #tpu.dot_dimension_numbers<[1], [0], [0], [1], [0, 0, 1, 1], [], []>} : vector<32x32xf32>, vector<32x32xf32>, vector<32x32xf32> -> vector<32x32xf32>
    %c0_6 = arith.constant 0 : index
    %c36 = arith.constant 36 : index
    %26 = vector.load %arg2[%c0_6, %c36] : memref<48x128xf32, #tpu.memory_space<vmem>>, vector<32x1xf32>
    %27 = vector.broadcast %26 : vector<32x1xf32> to vector<32x32xf32>
    %28 = arith.addf %25, %27 : vector<32x32xf32>
    %29 = vector.extract_strided_slice %28 {offsets = [0, 0], sizes = [32, 16], strides = [1, 1]} : vector<32x32xf32> to vector<32x16xf32>
    %cst_7 = arith.constant dense<0xFF800000> : vector<32xf32>
    %30 = vector.multi_reduction <maximumf>, %29, %cst_7 [1] : vector<32x16xf32> to vector<32xf32>
    %31 = vector.shape_cast %30 : vector<32xf32> to vector<32x1xf32>
    %32 = vector.extract_strided_slice %28 {offsets = [0, 16], sizes = [32, 16], strides = [1, 1]} : vector<32x32xf32> to vector<32x16xf32>
    %cst_8 = arith.constant dense<0xFF800000> : vector<32xf32>
    %33 = vector.multi_reduction <maximumf>, %32, %cst_8 [1] : vector<32x16xf32> to vector<32xf32>
    %34 = vector.shape_cast %33 : vector<32xf32> to vector<32x1xf32>
    %35 = tpu.concatenate %31, %34 in 1 : vector<32x1xf32>, vector<32x1xf32> -> vector<32x2xf32>
    %c0_9 = arith.constant 0 : index
    %c37 = arith.constant 37 : index
    %36 = vector.load %arg2[%c0_9, %c37] : memref<48x128xf32, #tpu.memory_space<vmem>>, vector<32x32xf32>
    %cst_10 = arith.constant dense<0.000000e+00> : vector<32x2xf32>
    %37 = tpu.matmul %36, %35, %cst_10 {dimension_numbers = #tpu.dot_dimension_numbers<[1], [0], [0], [1], [0, 0, 1, 1], [], []>} : vector<32x32xf32>, vector<32x2xf32>, vector<32x2xf32> -> vector<32x2xf32>
    %c0_11 = arith.constant 0 : index
    %c69 = arith.constant 69 : index
    %38 = vector.load %arg2[%c0_11, %c69] : memref<48x128xf32, #tpu.memory_space<vmem>>, vector<32x1xf32>
    %39 = vector.broadcast %38 : vector<32x1xf32> to vector<32x2xf32>
    %40 = arith.addf %37, %39 : vector<32x2xf32>
    %c40 = arith.constant 40 : index
    %c0_12 = arith.constant 0 : index
    %41 = vector.load %arg2[%c40, %c0_12] : memref<48x128xf32, #tpu.memory_space<vmem>>, vector<2x64xf32>
    %c0_13 = arith.constant 0 : index
    %c70 = arith.constant 70 : index
    %42 = vector.load %arg2[%c0_13, %c70] : memref<48x128xf32, #tpu.memory_space<vmem>>, vector<32x2xf32>
    %43 = vector.extract_strided_slice %42 {offsets = [0, 0], sizes = [32, 1], strides = [1, 1]} : vector<32x2xf32> to vector<32x1xf32>
    %44 = vector.extract_strided_slice %41 {offsets = [0, 0], sizes = [1, 64], strides = [1, 1]} : vector<2x64xf32> to vector<1x64xf32>
    %45 = vector.broadcast %43 : vector<32x1xf32> to vector<32x64xf32>
    %46 = vector.broadcast %44 : vector<1x64xf32> to vector<32x64xf32>
    %47 = arith.mulf %45, %46 : vector<32x64xf32>
    %48 = vector.extract_strided_slice %42 {offsets = [0, 1], sizes = [32, 1], strides = [1, 1]} : vector<32x2xf32> to vector<32x1xf32>
    %49 = vector.extract_strided_slice %41 {offsets = [1, 0], sizes = [1, 64], strides = [1, 1]} : vector<2x64xf32> to vector<1x64xf32>
    %50 = vector.broadcast %48 : vector<32x1xf32> to vector<32x64xf32>
    %51 = vector.broadcast %49 : vector<1x64xf32> to vector<32x64xf32>
    %52 = arith.mulf %50, %51 : vector<32x64xf32>
    %53 = arith.addf %47, %52 : vector<32x64xf32>
    %54 = vector.extract_strided_slice %40 {offsets = [0, 0], sizes = [32, 1], strides = [1, 1]} : vector<32x2xf32> to vector<32x1xf32>
    %55 = vector.broadcast %54 : vector<32x1xf32> to vector<32x64xf32>
    %56 = arith.addf %53, %55 : vector<32x64xf32>
    %cst_14 = arith.constant 0.000000e+00 : f32
    %57 = vector.broadcast %cst_14 : f32 to vector<32x64xf32>
    %58 = arith.maximumf %56, %57 : vector<32x64xf32>
    %59 = vector.extract_strided_slice %40 {offsets = [0, 1], sizes = [32, 1], strides = [1, 1]} : vector<32x2xf32> to vector<32x1xf32>
    %60 = vector.broadcast %59 : vector<32x1xf32> to vector<32x64xf32>
    %61 = arith.addf %53, %60 : vector<32x64xf32>
    %cst_15 = arith.constant 0.000000e+00 : f32
    %62 = vector.broadcast %cst_15 : f32 to vector<32x64xf32>
    %63 = arith.maximumf %61, %62 : vector<32x64xf32>
    %64 = tpu.concatenate %58, %63 in 1 : vector<32x64xf32>, vector<32x64xf32> -> vector<32x128xf32>
    %c32 = arith.constant 32 : index
    %c0_16 = arith.constant 0 : index
    %65 = vector.load %arg2[%c32, %c0_16] : memref<48x128xf32, #tpu.memory_space<vmem>>, vector<3x32xf32>
    %cst_17 = arith.constant dense<0.000000e+00> : vector<3x128xf32>
    %66 = tpu.matmul %65, %64, %cst_17 {dimension_numbers = #tpu.dot_dimension_numbers<[1], [0], [0], [1], [0, 0, 1, 1], [], []>} : vector<3x32xf32>, vector<32x128xf32>, vector<3x128xf32> -> vector<3x128xf32>
    %c32_18 = arith.constant 32 : index
    %c32_19 = arith.constant 32 : index
    %67 = vector.load %arg2[%c32_18, %c32_19] : memref<48x128xf32, #tpu.memory_space<vmem>>, vector<3x1xf32>
    %68 = vector.broadcast %67 : vector<3x1xf32> to vector<3x128xf32>
    %69 = arith.addf %66, %68 : vector<3x128xf32>
    %cst_20 = arith.constant 0.000000e+00 : f32
    %70 = vector.broadcast %cst_20 : f32 to vector<1x1xf32>
    %c0_21 = arith.constant 0 : index
    %c0_22 = arith.constant 0 : index
    %c0_23 = arith.constant 0 : index
    %71 = vector.load %arg1[%c0_21, %c0_22, %c0_23] : memref<2x64x3xf32, #tpu.memory_space<vmem>>, vector<1x64x3xf32>
    %72 = vector.shape_cast %71 : vector<1x64x3xf32> to vector<64x3xf32>
    %73 = vector.extract_strided_slice %69 {offsets = [0, 0], sizes = [3, 64], strides = [1, 1]} : vector<3x128xf32> to vector<3x64xf32>
    %74 = vector.extract_strided_slice %72 {offsets = [0, 0], sizes = [64, 1], strides = [1, 1]} : vector<64x3xf32> to vector<64x1xf32>
    %75 = vector.extract_strided_slice %73 {offsets = [0, 0], sizes = [1, 64], strides = [1, 1]} : vector<3x64xf32> to vector<1x64xf32>
    %76 = vector.broadcast %74 : vector<64x1xf32> to vector<64x64xf32>
    %77 = vector.broadcast %75 : vector<1x64xf32> to vector<64x64xf32>
    %78 = arith.subf %76, %77 : vector<64x64xf32>
    %79 = vector.extract_strided_slice %72 {offsets = [0, 1], sizes = [64, 1], strides = [1, 1]} : vector<64x3xf32> to vector<64x1xf32>
    %80 = vector.extract_strided_slice %73 {offsets = [1, 0], sizes = [1, 64], strides = [1, 1]} : vector<3x64xf32> to vector<1x64xf32>
    %81 = vector.broadcast %79 : vector<64x1xf32> to vector<64x64xf32>
    %82 = vector.broadcast %80 : vector<1x64xf32> to vector<64x64xf32>
    %83 = arith.subf %81, %82 : vector<64x64xf32>
    %84 = vector.extract_strided_slice %72 {offsets = [0, 2], sizes = [64, 1], strides = [1, 1]} : vector<64x3xf32> to vector<64x1xf32>
    %85 = vector.extract_strided_slice %73 {offsets = [2, 0], sizes = [1, 64], strides = [1, 1]} : vector<3x64xf32> to vector<1x64xf32>
    %86 = vector.broadcast %84 : vector<64x1xf32> to vector<64x64xf32>
    %87 = vector.broadcast %85 : vector<1x64xf32> to vector<64x64xf32>
    %88 = arith.subf %86, %87 : vector<64x64xf32>
    %89 = arith.mulf %78, %78 : vector<64x64xf32>
    %90 = arith.mulf %83, %83 : vector<64x64xf32>
    %91 = arith.addf %89, %90 : vector<64x64xf32>
    %92 = arith.mulf %88, %88 : vector<64x64xf32>
    %93 = arith.addf %91, %92 : vector<64x64xf32>
    %cst_24 = arith.constant dense<0x7F800000> : vector<64xf32>
    %94 = vector.multi_reduction <minimumf>, %93, %cst_24 [1] : vector<64x64xf32> to vector<64xf32>
    %95 = vector.shape_cast %94 : vector<64xf32> to vector<64x1xf32>
    %96 = math.sqrt %95 : vector<64x1xf32>
    %cst_25 = arith.constant dense<0x7F800000> : vector<64xf32>
    %97 = vector.multi_reduction <minimumf>, %93, %cst_25 [0] : vector<64x64xf32> to vector<64xf32>
    %98 = vector.shape_cast %97 : vector<64xf32> to vector<1x64xf32>
    %99 = math.sqrt %98 : vector<1x64xf32>
    %cst_26 = arith.constant dense<0.000000e+00> : vector<1xf32>
    %100 = vector.multi_reduction <add>, %96, %cst_26 [0] : vector<64x1xf32> to vector<1xf32>
    %101 = vector.shape_cast %100 : vector<1xf32> to vector<1x1xf32>
    %cst_27 = arith.constant 1.562500e-02 : f32
    %102 = vector.broadcast %cst_27 : f32 to vector<1x1xf32>
    %103 = arith.mulf %101, %102 : vector<1x1xf32>
    %cst_28 = arith.constant dense<0.000000e+00> : vector<1xf32>
    %104 = vector.multi_reduction <add>, %99, %cst_28 [1] : vector<1x64xf32> to vector<1xf32>
    %105 = vector.shape_cast %104 : vector<1xf32> to vector<1x1xf32>
    %cst_29 = arith.constant 1.562500e-02 : f32
    %106 = vector.broadcast %cst_29 : f32 to vector<1x1xf32>
    %107 = arith.mulf %105, %106 : vector<1x1xf32>
    %108 = arith.addf %103, %107 : vector<1x1xf32>
    %cst_30 = arith.constant 5.000000e-01 : f32
    %109 = vector.broadcast %cst_30 : f32 to vector<1x1xf32>
    %110 = arith.mulf %109, %108 : vector<1x1xf32>
    %111 = arith.addf %70, %110 : vector<1x1xf32>
    %c1 = arith.constant 1 : index
    %c0_31 = arith.constant 0 : index
    %c0_32 = arith.constant 0 : index
    %112 = vector.load %arg1[%c1, %c0_31, %c0_32] : memref<2x64x3xf32, #tpu.memory_space<vmem>>, vector<1x64x3xf32>
    %113 = vector.shape_cast %112 : vector<1x64x3xf32> to vector<64x3xf32>
    %114 = vector.extract_strided_slice %69 {offsets = [0, 64], sizes = [3, 64], strides = [1, 1]} : vector<3x128xf32> to vector<3x64xf32>
    %115 = vector.extract_strided_slice %113 {offsets = [0, 0], sizes = [64, 1], strides = [1, 1]} : vector<64x3xf32> to vector<64x1xf32>
    %116 = vector.extract_strided_slice %114 {offsets = [0, 0], sizes = [1, 64], strides = [1, 1]} : vector<3x64xf32> to vector<1x64xf32>
    %117 = vector.broadcast %115 : vector<64x1xf32> to vector<64x64xf32>
    %118 = vector.broadcast %116 : vector<1x64xf32> to vector<64x64xf32>
    %119 = arith.subf %117, %118 : vector<64x64xf32>
    %120 = vector.extract_strided_slice %113 {offsets = [0, 1], sizes = [64, 1], strides = [1, 1]} : vector<64x3xf32> to vector<64x1xf32>
    %121 = vector.extract_strided_slice %114 {offsets = [1, 0], sizes = [1, 64], strides = [1, 1]} : vector<3x64xf32> to vector<1x64xf32>
    %122 = vector.broadcast %120 : vector<64x1xf32> to vector<64x64xf32>
    %123 = vector.broadcast %121 : vector<1x64xf32> to vector<64x64xf32>
    %124 = arith.subf %122, %123 : vector<64x64xf32>
    %125 = vector.extract_strided_slice %113 {offsets = [0, 2], sizes = [64, 1], strides = [1, 1]} : vector<64x3xf32> to vector<64x1xf32>
    %126 = vector.extract_strided_slice %114 {offsets = [2, 0], sizes = [1, 64], strides = [1, 1]} : vector<3x64xf32> to vector<1x64xf32>
    %127 = vector.broadcast %125 : vector<64x1xf32> to vector<64x64xf32>
    %128 = vector.broadcast %126 : vector<1x64xf32> to vector<64x64xf32>
    %129 = arith.subf %127, %128 : vector<64x64xf32>
    %130 = arith.mulf %119, %119 : vector<64x64xf32>
    %131 = arith.mulf %124, %124 : vector<64x64xf32>
    %132 = arith.addf %130, %131 : vector<64x64xf32>
    %133 = arith.mulf %129, %129 : vector<64x64xf32>
    %134 = arith.addf %132, %133 : vector<64x64xf32>
    %cst_33 = arith.constant dense<0x7F800000> : vector<64xf32>
    %135 = vector.multi_reduction <minimumf>, %134, %cst_33 [1] : vector<64x64xf32> to vector<64xf32>
    %136 = vector.shape_cast %135 : vector<64xf32> to vector<64x1xf32>
    %137 = math.sqrt %136 : vector<64x1xf32>
    %cst_34 = arith.constant dense<0x7F800000> : vector<64xf32>
    %138 = vector.multi_reduction <minimumf>, %134, %cst_34 [0] : vector<64x64xf32> to vector<64xf32>
    %139 = vector.shape_cast %138 : vector<64xf32> to vector<1x64xf32>
    %140 = math.sqrt %139 : vector<1x64xf32>
    %cst_35 = arith.constant dense<0.000000e+00> : vector<1xf32>
    %141 = vector.multi_reduction <add>, %137, %cst_35 [0] : vector<64x1xf32> to vector<1xf32>
    %142 = vector.shape_cast %141 : vector<1xf32> to vector<1x1xf32>
    %cst_36 = arith.constant 1.562500e-02 : f32
    %143 = vector.broadcast %cst_36 : f32 to vector<1x1xf32>
    %144 = arith.mulf %142, %143 : vector<1x1xf32>
    %cst_37 = arith.constant dense<0.000000e+00> : vector<1xf32>
    %145 = vector.multi_reduction <add>, %140, %cst_37 [1] : vector<1x64xf32> to vector<1xf32>
    %146 = vector.shape_cast %145 : vector<1xf32> to vector<1x1xf32>
    %cst_38 = arith.constant 1.562500e-02 : f32
    %147 = vector.broadcast %cst_38 : f32 to vector<1x1xf32>
    %148 = arith.mulf %146, %147 : vector<1x1xf32>
    %149 = arith.addf %144, %148 : vector<1x1xf32>
    %cst_39 = arith.constant 5.000000e-01 : f32
    %150 = vector.broadcast %cst_39 : f32 to vector<1x1xf32>
    %151 = arith.mulf %150, %149 : vector<1x1xf32>
    %152 = arith.addf %111, %151 : vector<1x1xf32>
    %cst_40 = arith.constant 5.000000e-01 : f32
    %153 = vector.broadcast %cst_40 : f32 to vector<1x1xf32>
    %154 = arith.mulf %152, %153 : vector<1x1xf32>
    %cst_41 = arith.constant 0.000000e+00 : f32
    %155 = vector.broadcast %cst_41 : f32 to vector<1x128xf32>
    %156 = vector.broadcast %154 : vector<1x1xf32> to vector<1x128xf32>
    %157 = arith.addf %156, %155 : vector<1x128xf32>
    %cst_42 = arith.constant 0.000000e+00 : f32
    %158 = vector.broadcast %cst_42 : f32 to vector<4x128xf32>
    %159 = tpu.concatenate %69, %157, %158 in 0 : vector<3x128xf32>, vector<1x128xf32>, vector<4x128xf32> -> vector<8x128xf32>
    %c0_43 = arith.constant 0 : index
    %c0_44 = arith.constant 0 : index
    %160 = vector.load %arg3[%c0_43, %c0_44] : memref<8x128xf32, #tpu.memory_space<vmem>>, vector<8x128xf32>
    tpu.vector_store %arg3[%c0_43, %c0_44], %159 {strides = array<i32>} : memref<8x128xf32, #tpu.memory_space<vmem>>, vector<8x128xf32>,
    return
  }
}

</mosaic_0001>

<llo_original>
// kernel: tpu_custom_call.1
$region0: #{tpu_custom_call.1}
  #allocation0 [shape = 'u32[]', space=smem, size = 0x4, offset = 0x4, fixed_abs, tag = 'smem constant byte address 0x4 - core index']
  #allocation1 [shape = 'u32[144,128]{1,0:T(1,128)}', space=vmem, size = 0x12000, scoped, tag = 'internal scratch']
  %s0 = inlined_call_operand.vmem [shape: f32[3,32], index: 0, kind: input, shape index: {}]
  %s1 = inlined_call_operand.vmem [shape: f32[2,64,3], index: 1, kind: input, shape index: {}]
  %s2 = inlined_call_operand.vmem [shape: f32[48,128], index: 2, kind: input, shape index: {}]
  %s3 = inlined_call_operand.hbm [shape: f32[8,128], index: 3, kind: output, shape index: {}]
  %s4 = sld [smem:[#allocation0]]
  $region22: #{tpu_custom_call.1} parent=0
    _
  %s6 = ssub.s32 1, %s4
  %s7 = scalar_select 0, %s6, %s4
  $region1: #{tpu_custom_call.1} parent=0
    #allocation2 [shape = 'u8[4096]{0}', space=vmem, size = 0x1000, scoped, tag = 'output window, operand 0, single buffered']
    #allocation3 [shape = 's32[1]{0}', space=sflag, size = 0x4, scoped, tag = 'scoped memory for tpu_custom_call.1']
    %8 = vsyncpa [#allocation3], 0
    // Predicated region
    $region2: #{tpu_custom_call.1} parent=1 // pred_check
      _
    $region3: #{tpu_custom_call.1} parent=1 // pred_check_branch
      %10 = sbr.rel (0) target = $region5
    $region4: #{tpu_custom_call.1} parent=1 // pred_region
      _
    $region5: #{tpu_custom_call.1} parent=1 // pred_fallthru
      _
    // Predicated region
    $region6: #{tpu_custom_call.1} parent=1 // pred_check
      _
    $region7: #{tpu_custom_call.1} parent=1 // pred_check_branch
      %12 = sbr.rel (0) target = $region9
    $region8: #{tpu_custom_call.1} parent=1 // pred_region
      _
    $region9: #{tpu_custom_call.1} parent=1 // pred_fallthru
      _
    // Predicated region
    $region10: #{tpu_custom_call.1} parent=1 // pred_check
      _
    $region11: #{tpu_custom_call.1} parent=1 // pred_check_branch
      %14 = sbr.rel (0) target = $region13
    $region12: #{tpu_custom_call.1} parent=1 // pred_region
      _
    $region13: #{tpu_custom_call.1} parent=1 // pred_fallthru
      _
    %v15 = vld [vmem:[%s0] sm:$0x7]
    %v16 = vld [vmem:[%s2] sm:$0xff]
    %v17 = vld [vmem:[%s2 + $0x8] sm:$0xff]
    %v18 = vld [vmem:[%s2 + $0x10] sm:$0xff]
    %v19 = vld [vmem:[%s2 + $0x18] sm:$0xff]
    %21 = vset.pattern.permute.xlu0 0
    %22 = vperm.xlu0 %21, %v16
    %v23 = vpop.permute.xlu0 %22
    %26 = vset.pattern.permute.xlu0 0
    %27 = vperm.xlu0 %26, %v17
    %v28 = vpop.permute.xlu0 %27
    %31 = vset.pattern.permute.xlu0 0
    %32 = vperm.xlu0 %31, %v18
    %v33 = vpop.permute.xlu0 %32
    %36 = vset.pattern.permute.xlu0 0
    %37 = vperm.xlu0 %36, %v19
    %v38 = vpop.permute.xlu0 %37
    %v40 = vlaneseq
    %v41 = vshrl.u32 %v40, 7
    %v42 = vsub.s32 0, %v41
    %v43 = vrot.slane %v15, %v42
    %v44 = vmul.f32 %v23, %v43
    %v45 = vmul.f32 %v28, %v43
    %v46 = vmul.f32 %v33, %v43
    %v47 = vmul.f32 %v38, %v43
    %48 = vset.pattern.permute.xlu0 1
    %49 = vperm.xlu0 %48, %v16
    %v50 = vpop.permute.xlu0 %49
    %52 = vset.pattern.permute.xlu0 1
    %53 = vperm.xlu0 %52, %v17
    %v54 = vpop.permute.xlu0 %53
    %56 = vset.pattern.permute.xlu0 1
    %57 = vperm.xlu0 %56, %v18
    %v58 = vpop.permute.xlu0 %57
    %60 = vset.pattern.permute.xlu0 1
    %61 = vperm.xlu0 %60, %v19
    %v62 = vpop.permute.xlu0 %61
    %v64 = vlaneseq
    %v65 = vshrl.u32 %v64, 7
    %v66 = vsub.s32 1, %v65
    %v67 = vrot.slane %v15, %v66
    %v68 = vmul.f32 %v50, %v67
    %v69 = vmul.f32 %v54, %v67
    %v70 = vmul.f32 %v58, %v67
    %v71 = vmul.f32 %v62, %v67
    %v72 = vadd.f32 %v44, %v68
    %v73 = vadd.f32 %v45, %v69
    %v74 = vadd.f32 %v46, %v70
    %v75 = vadd.f32 %v47, %v71
    %76 = vset.pattern.permute.xlu0 2
    %77 = vperm.xlu0 %76, %v16
    %v78 = vpop.permute.xlu0 %77
    %80 = vset.pattern.permute.xlu0 2
    %81 = vperm.xlu0 %80, %v17
    %v82 = vpop.permute.xlu0 %81
    %84 = vset.pattern.permute.xlu0 2
    %85 = vperm.xlu0 %84, %v18
    %v86 = vpop.permute.xlu0 %85
    %88 = vset.pattern.permute.xlu0 2
    %89 = vperm.xlu0 %88, %v19
    %v90 = vpop.permute.xlu0 %89
    %v92 = vlaneseq
    %v93 = vshrl.u32 %v92, 7
    %v94 = vsub.s32 2, %v93
    %v95 = vrot.slane %v15, %v94
    %v96 = vmul.f32 %v78, %v95
    %v97 = vmul.f32 %v82, %v95
    %v98 = vmul.f32 %v86, %v95
    %v99 = vmul.f32 %v90, %v95
    %v100 = vadd.f32 %v72, %v96
    %v101 = vadd.f32 %v73, %v97
    %v102 = vadd.f32 %v74, %v98
    %v103 = vadd.f32 %v75, %v99
    %104 = vset.pattern.permute.xlu0 3
    %105 = vperm.xlu0 %104, %v16
    %v106 = vpop.permute.xlu0 %105
    %108 = vset.pattern.permute.xlu0 3
    %109 = vperm.xlu0 %108, %v17
    %v110 = vpop.permute.xlu0 %109
    %112 = vset.pattern.permute.xlu0 3
    %113 = vperm.xlu0 %112, %v18
    %v114 = vpop.permute.xlu0 %113
    %116 = vset.pattern.permute.xlu0 3
    %117 = vperm.xlu0 %116, %v19
    %v118 = vpop.permute.xlu0 %117
    %v120 = vadd.f32 %v100, %v106
    %v121 = vadd.f32 %v101, %v110
    %v122 = vadd.f32 %v102, %v114
    %v123 = vadd.f32 %v103, %v118
    %v124 = vmax.f32 %v120, 0.0
    %v125 = vmax.f32 %v121, 0.0
    %v126 = vmax.f32 %v122, 0.0
    %v127 = vmax.f32 %v123, 0.0
    %128 = vset.pattern.permute.xlu0 36
    %129 = vperm.xlu0 %128, %v16
    %v130 = vpop.permute.xlu0 %129
    %132 = vset.pattern.permute.xlu0 36
    %133 = vperm.xlu0 %132, %v17
    %v134 = vpop.permute.xlu0 %133
    %136 = vset.pattern.permute.xlu0 36
    %137 = vperm.xlu0 %136, %v18
    %v138 = vpop.permute.xlu0 %137
    %140 = vset.pattern.permute.xlu0 36
    %141 = vperm.xlu0 %140, %v19
    %v142 = vpop.permute.xlu0 %141
    %144 = vrot.lane.b32.xlu0 %v16, 124
    %v145 = vpop.permute.xlu0 %144
    %146 = vrot.lane.b32.xlu0 %v17, 124
    %v147 = vpop.permute.xlu0 %146
    %148 = vrot.lane.b32.xlu0 %v18, 124
    %v149 = vpop.permute.xlu0 %148
    %150 = vrot.lane.b32.xlu0 %v19, 124
    %v151 = vpop.permute.xlu0 %150
    %vm152 = vcmask 261120
    %v153 = vsel %vm152, %v145, 0
    %v155 = vsel %vm152, %v147, 0
    %v157 = vsel %vm152, %v149, 0
    %v159 = vsel %vm152, %v151, 0
    %161 = vmatprep.subr.mxu0 0.0
    %162 = vmatpush1.msra.mxu0 0.0
    %163 = vmatprep.subr.mxu0 0.0
    %164 = vmatpush1.msra.mxu0 0.0
    %165 = vmatprep.subr.mxu0 0.0
    %166 = vmatpush1.msra.mxu0 0.0
    %167 = vmatprep.subr.mxu0 0.0
    %168 = vmatpush1.msra.mxu0 0.0
    %169 = vmatprep.subr.mxu0 0.0
    %170 = vmatpush1.msra.mxu0 0.0
    %171 = vmatprep.subr.mxu0 0.0
    %172 = vmatpush1.msra.mxu0 0.0
    %173 = vmatprep.subr.mxu0 0.0
    %174 = vmatpush1.msra.mxu0 0.0
    %175 = vmatprep.subr.mxu0 0.0
    %176 = vmatpush1.msra.mxu0 0.0
    %177 = vmatprep.subr.mxu0 0.0
    %178 = vmatpush1.msra.mxu0 0.0
    %179 = vmatprep.subr.mxu0 0.0
    %180 = vmatpush1.msra.mxu0 0.0
    %181 = vmatprep.subr.mxu0 0.0
    %182 = vmatpush1.msra.mxu0 0.0
    %183 = vmatprep.subr.mxu0 0.0
    %184 = vmatpush1.msra.mxu0 0.0
    %185 = vmatprep.subr.mxu0 0.0
    %186 = vmatpush1.msra.mxu0 %v127
    %187 = vmatprep.subr.mxu0 0.0
    %188 = vmatpush1.msra.mxu0 %v126
    %189 = vmatprep.subr.mxu0 0.0
    %190 = vmatpush1.msra.mxu0 %v125
    %191 = vmatprep.subr.mxu0 0.0
    %192 = vmatpush1.msra.mxu0 %v124
    %193 = vmatprep.subr.mxu0 0.0
    %194 = vmatpush2.msra.mxu0 0.0
    %195 = vmatprep.subr.mxu0 0.0
    %196 = vmatpush2.msra.mxu0 0.0
    %197 = vmatprep.subr.mxu0 0.0
    %198 = vmatpush2.msra.mxu0 0.0
    %199 = vmatprep.subr.mxu0 0.0
    %200 = vmatpush2.msra.mxu0 0.0
    %201 = vmatprep.subr.mxu0 0.0
    %202 = vmatpush2.msra.mxu0 0.0
    %203 = vmatprep.subr.mxu0 0.0
    %204 = vmatpush2.msra.mxu0 0.0
    %205 = vmatprep.subr.mxu0 0.0
    %206 = vmatpush2.msra.mxu0 0.0
    %207 = vmatprep.subr.mxu0 0.0
    %208 = vmatpush2.msra.mxu0 0.0
    %209 = vmatprep.subr.mxu0 0.0
    %210 = vmatpush2.msra.mxu0 0.0
    %211 = vmatprep.subr.mxu0 0.0
    %212 = vmatpush2.msra.mxu0 0.0
    %213 = vmatprep.subr.mxu0 0.0
    %214 = vmatpush2.msra.mxu0 0.0
    %215 = vmatprep.subr.mxu0 0.0
    %216 = vmatpush2.msra.mxu0 0.0
    %217 = vmatprep.subr.mxu0 0.0
    %218 = vmatpush2.msra.mxu0 0.0
    %219 = vmatprep.subr.mxu0 0.0
    %220 = vmatpush2.msra.mxu0 0.0
    %221 = vmatprep.subr.mxu0 0.0
    %222 = vmatpush2.msra.mxu0 0.0
    %223 = vmatprep.subr.mxu0 0.0
    %224 = vmatpush2.msra.mxu0 0.0
    %225 = vmatprep.mubr.f32.mxu0 0.0
    %226 = vmatmul.mubr.f32.gmra.mxu0 %v153
    %v227 = vpop.f32.mrf.mxu0
    %v228 = vadd.f32 %v130, %v227
    %v229 = vpop.f32.mrf.mxu0
    %230 = vmatprep.mubr.f32.mxu0 0.0
    %231 = vmatmul.mubr.f32.gmra.mxu0 %v155
    %v232 = vpop.f32.mrf.mxu0
    %v233 = vadd.f32 %v134, %v232
    %v234 = vpop.f32.mrf.mxu0
    %235 = vmatprep.mubr.f32.mxu0 0.0
    %236 = vmatmul.mubr.f32.gmra.mxu0 %v157
    %v237 = vpop.f32.mrf.mxu0
    %v238 = vadd.f32 %v138, %v237
    %v239 = vpop.f32.mrf.mxu0
    %240 = vmatprep.mubr.f32.mxu0 0.0
    %241 = vmatmul.mubr.f32.gmra.mxu0 %v159
    %v242 = vpop.f32.mrf.mxu0
    %v243 = vadd.f32 %v142, %v242
    %v244 = vpop.f32.mrf.mxu0
    %245 = vdwg.mxu0
    %vm246 = vcmask 130048
    %v247 = vsel %vm246, %v228, -inf
    %248 = vmax.xlane.f32.xlu0 %v247
    %v249 = vpop.xlane.xlu0 %248
    %v250 = vsel %vm246, %v233, -inf
    %251 = vmax.xlane.f32.xlu0 %v250
    %v252 = vpop.xlane.xlu0 %251
    %v253 = vsel %vm246, %v238, -inf
    %254 = vmax.xlane.f32.xlu0 %v253
    %v255 = vpop.xlane.xlu0 %254
    %v256 = vsel %vm246, %v243, -inf
    %257 = vmax.xlane.f32.xlu0 %v256
    %v258 = vpop.xlane.xlu0 %257
    %vm259 = vcmask 261248
    %v260 = vsel %vm259, %v228, -inf
    %261 = vmax.xlane.f32.xlu0 %v260
    %v262 = vpop.xlane.xlu0 %261
    %v263 = vsel %vm259, %v233, -inf
    %264 = vmax.xlane.f32.xlu0 %v263
    %v265 = vpop.xlane.xlu0 %264
    %v266 = vsel %vm259, %v238, -inf
    %267 = vmax.xlane.f32.xlu0 %v266
    %v268 = vpop.xlane.xlu0 %267
    %v269 = vsel %vm259, %v243, -inf
    %270 = vmax.xlane.f32.xlu0 %v269
    %v271 = vpop.xlane.xlu0 %270
    %vm272 = vcmask 7168
    %v273 = vsel %vm272, %v249, %v262
    %v274 = vsel %vm272, %v252, %v265
    %v275 = vsel %vm272, %v255, %v268
    %v276 = vsel %vm272, %v258, %v271
    %277 = vset.pattern.permute.xlu0 69
    %278 = vperm.xlu0 %277, %v16
    %v279 = vpop.permute.xlu0 %278
    %281 = vset.pattern.permute.xlu0 69
    %282 = vperm.xlu0 %281, %v17
    %v283 = vpop.permute.xlu0 %282
    %285 = vset.pattern.permute.xlu0 69
    %286 = vperm.xlu0 %285, %v18
    %v287 = vpop.permute.xlu0 %286
    %289 = vset.pattern.permute.xlu0 69
    %290 = vperm.xlu0 %289, %v19
    %v291 = vpop.permute.xlu0 %290
    %293 = vrot.lane.b32.xlu0 %v16, 91
    %v294 = vpop.permute.xlu0 %293
    %295 = vrot.lane.b32.xlu0 %v17, 91
    %v296 = vpop.permute.xlu0 %295
    %297 = vrot.lane.b32.xlu0 %v18, 91
    %v298 = vpop.permute.xlu0 %297
    %299 = vrot.lane.b32.xlu0 %v19, 91
    %v300 = vpop.permute.xlu0 %299
    %v301 = vsel %vm152, %v294, 0
    %v303 = vsel %vm152, %v296, 0
    %v305 = vsel %vm152, %v298, 0
    %v307 = vsel %vm152, %v300, 0
    %309 = vmatprep.subr.mxu0 0.0
    %310 = vmatpush1.msra.mxu0 0.0
    %311 = vmatprep.subr.mxu0 0.0
    %312 = vmatpush1.msra.mxu0 0.0
    %313 = vmatprep.subr.mxu0 0.0
    %314 = vmatpush1.msra.mxu0 0.0
    %315 = vmatprep.subr.mxu0 0.0
    %316 = vmatpush1.msra.mxu0 0.0
    %317 = vmatprep.subr.mxu0 0.0
    %318 = vmatpush1.msra.mxu0 0.0
    %319 = vmatprep.subr.mxu0 0.0
    %320 = vmatpush1.msra.mxu0 0.0
    %321 = vmatprep.subr.mxu0 0.0
    %322 = vmatpush1.msra.mxu0 0.0
    %323 = vmatprep.subr.mxu0 0.0
    %324 = vmatpush1.msra.mxu0 0.0
    %325 = vmatprep.subr.mxu0 0.0
    %326 = vmatpush1.msra.mxu0 0.0
    %327 = vmatprep.subr.mxu0 0.0
    %328 = vmatpush1.msra.mxu0 0.0
    %329 = vmatprep.subr.mxu0 0.0
    %330 = vmatpush1.msra.mxu0 0.0
    %331 = vmatprep.subr.mxu0 0.0
    %332 = vmatpush1.msra.mxu0 0.0
    %333 = vmatprep.subr.mxu0 0.0
    %334 = vmatpush1.msra.mxu0 %v276
    %335 = vmatprep.subr.mxu0 0.0
    %336 = vmatpush1.msra.mxu0 %v275
    %337 = vmatprep.subr.mxu0 0.0
    %338 = vmatpush1.msra.mxu0 %v274
    %339 = vmatprep.subr.mxu0 0.0
    %340 = vmatpush1.msra.mxu0 %v273
    %341 = vmatprep.subr.mxu0 0.0
    %342 = vmatpush2.msra.mxu0 0.0
    %343 = vmatprep.subr.mxu0 0.0
    %344 = vmatpush2.msra.mxu0 0.0
    %345 = vmatprep.subr.mxu0 0.0
    %346 = vmatpush2.msra.mxu0 0.0
    %347 = vmatprep.subr.mxu0 0.0
    %348 = vmatpush2.msra.mxu0 0.0
    %349 = vmatprep.subr.mxu0 0.0
    %350 = vmatpush2.msra.mxu0 0.0
    %351 = vmatprep.subr.mxu0 0.0
    %352 = vmatpush2.msra.mxu0 0.0
    %353 = vmatprep.subr.mxu0 0.0
    %354 = vmatpush2.msra.mxu0 0.0
    %355 = vmatprep.subr.mxu0 0.0
    %356 = vmatpush2.msra.mxu0 0.0
    %357 = vmatprep.subr.mxu0 0.0
    %358 = vmatpush2.msra.mxu0 0.0
    %359 = vmatprep.subr.mxu0 0.0
    %360 = vmatpush2.msra.mxu0 0.0
    %361 = vmatprep.subr.mxu0 0.0
    %362 = vmatpush2.msra.mxu0 0.0
    %363 = vmatprep.subr.mxu0 0.0
    %364 = vmatpush2.msra.mxu0 0.0
    %365 = vmatprep.subr.mxu0 0.0
    %366 = vmatpush2.msra.mxu0 0.0
    %367 = vmatprep.subr.mxu0 0.0
    %368 = vmatpush2.msra.mxu0 0.0
    %369 = vmatprep.subr.mxu0 0.0
    %370 = vmatpush2.msra.mxu0 0.0
    %371 = vmatprep.subr.mxu0 0.0
    %372 = vmatpush2.msra.mxu0 0.0
    %373 = vmatprep.mubr.f32.mxu0 0.0
    %374 = vmatmul.mubr.f32.gmra.mxu0 %v301
    %v375 = vpop.f32.mrf.mxu0
    %v376 = vadd.f32 %v279, %v375
    %v377 = vpop.f32.mrf.mxu0
    %378 = vmatprep.mubr.f32.mxu0 0.0
    %379 = vmatmul.mubr.f32.gmra.mxu0 %v303
    %v380 = vpop.f32.mrf.mxu0
    %v381 = vadd.f32 %v283, %v380
    %v382 = vpop.f32.mrf.mxu0
    %383 = vmatprep.mubr.f32.mxu0 0.0
    %384 = vmatmul.mubr.f32.gmra.mxu0 %v305
    %v385 = vpop.f32.mrf.mxu0
    %v386 = vadd.f32 %v287, %v385
    %v387 = vpop.f32.mrf.mxu0
    %388 = vmatprep.mubr.f32.mxu0 0.0
    %389 = vmatmul.mubr.f32.gmra.mxu0 %v307
    %v390 = vpop.f32.mrf.mxu0
    %v391 = vadd.f32 %v291, %v390
    %v392 = vpop.f32.mrf.mxu0
    %393 = vdwg.mxu0
    %v394 = vld [vmem:[%s2 + $0x28] sm:$0x3]
    %395 = vset.pattern.permute.xlu0 70
    %396 = vperm.xlu0 %395, %v16
    %v397 = vpop.permute.xlu0 %396
    %399 = vset.pattern.permute.xlu0 70
    %400 = vperm.xlu0 %399, %v17
    %v401 = vpop.permute.xlu0 %400
    %403 = vset.pattern.permute.xlu0 70
    %404 = vperm.xlu0 %403, %v18
    %v405 = vpop.permute.xlu0 %404
    %407 = vset.pattern.permute.xlu0 70
    %408 = vperm.xlu0 %407, %v19
    %v409 = vpop.permute.xlu0 %408
    %v411 = vlaneseq
    %v412 = vshrl.u32 %v411, 7
    %v413 = vsub.s32 0, %v412
    %v414 = vrot.slane %v394, %v413
    %v415 = vmul.f32 %v397, %v414
    %v416 = vmul.f32 %v401, %v414
    %v417 = vmul.f32 %v405, %v414
    %v418 = vmul.f32 %v409, %v414
    %419 = vset.pattern.permute.xlu0 71
    %420 = vperm.xlu0 %419, %v16
    %v421 = vpop.permute.xlu0 %420
    %423 = vset.pattern.permute.xlu0 71
    %424 = vperm.xlu0 %423, %v17
    %v425 = vpop.permute.xlu0 %424
    %427 = vset.pattern.permute.xlu0 71
    %428 = vperm.xlu0 %427, %v18
    %v429 = vpop.permute.xlu0 %428
    %431 = vset.pattern.permute.xlu0 71
    %432 = vperm.xlu0 %431, %v19
    %v433 = vpop.permute.xlu0 %432
    %v435 = vlaneseq
    %v436 = vshrl.u32 %v435, 7
    %v437 = vsub.s32 1, %v436
    %v438 = vrot.slane %v394, %v437
    %v439 = vmul.f32 %v421, %v438
    %v440 = vmul.f32 %v425, %v438
    %v441 = vmul.f32 %v429, %v438
    %v442 = vmul.f32 %v433, %v438
    %v443 = vadd.f32 %v415, %v439
    %v444 = vadd.f32 %v416, %v440
    %v445 = vadd.f32 %v417, %v441
    %v446 = vadd.f32 %v418, %v442
    %448 = vset.pattern.permute.xlu0 0
    %449 = vperm.xlu0 %448, %v376
    %v450 = vpop.permute.xlu0 %449
    %453 = vset.pattern.permute.xlu0 0
    %454 = vperm.xlu0 %453, %v381
    %v455 = vpop.permute.xlu0 %454
    %458 = vset.pattern.permute.xlu0 0
    %459 = vperm.xlu0 %458, %v386
    %v460 = vpop.permute.xlu0 %459
    %463 = vset.pattern.permute.xlu0 0
    %464 = vperm.xlu0 %463, %v391
    %v465 = vpop.permute.xlu0 %464
    %v467 = vadd.f32 %v443, %v450
    %v468 = vadd.f32 %v444, %v455
    %v469 = vadd.f32 %v445, %v460
    %v470 = vadd.f32 %v446, %v465
    %v471 = vmax.f32 %v467, 0.0
    %v472 = vmax.f32 %v468, 0.0
    %v473 = vmax.f32 %v469, 0.0
    %v474 = vmax.f32 %v470, 0.0
    %475 = vset.pattern.permute.xlu0 1
    %476 = vperm.xlu0 %475, %v376
    %v477 = vpop.permute.xlu0 %476
    %479 = vset.pattern.permute.xlu0 1
    %480 = vperm.xlu0 %479, %v381
    %v481 = vpop.permute.xlu0 %480
    %483 = vset.pattern.permute.xlu0 1
    %484 = vperm.xlu0 %483, %v386
    %v485 = vpop.permute.xlu0 %484
    %487 = vset.pattern.permute.xlu0 1
    %488 = vperm.xlu0 %487, %v391
    %v489 = vpop.permute.xlu0 %488
    %v491 = vadd.f32 %v443, %v477
    %v492 = vadd.f32 %v444, %v481
    %v493 = vadd.f32 %v445, %v485
    %v494 = vadd.f32 %v446, %v489
    %v495 = vmax.f32 %v491, 0.0
    %v496 = vmax.f32 %v492, 0.0
    %v497 = vmax.f32 %v493, 0.0
    %v498 = vmax.f32 %v494, 0.0
    %503 = vrot.lane.b32.xlu0 %v495, 64
    %v504 = vpop.permute.xlu0 %503
    %505 = vrot.lane.b32.xlu0 %v496, 64
    %v506 = vpop.permute.xlu0 %505
    %507 = vrot.lane.b32.xlu0 %v497, 64
    %v508 = vpop.permute.xlu0 %507
    %509 = vrot.lane.b32.xlu0 %v498, 64
    %v510 = vpop.permute.xlu0 %509
    %vm515 = vcmask 523264
    %v516 = vsel %vm515, %v471, %v504
    %v517 = vsel %vm515, %v472, %v506
    %v518 = vsel %vm515, %v473, %v508
    %v519 = vsel %vm515, %v474, %v510
    %v520 = vld [vmem:[%s2 + $0x20] sm:$0x7]
    %522 = vset.pattern.permute.xlu0 32
    %523 = vperm.xlu0 %522, %v520
    %v524 = vpop.permute.xlu0 %523
    %v526 = vsel %vm152, %v520, 0
    %528 = vmatprep.subr.mxu0 0.0
    %529 = vmatpush1.msra.mxu0 0.0
    %530 = vmatprep.subr.mxu0 0.0
    %531 = vmatpush1.msra.mxu0 0.0
    %532 = vmatprep.subr.mxu0 0.0
    %533 = vmatpush1.msra.mxu0 0.0
    %534 = vmatprep.subr.mxu0 0.0
    %535 = vmatpush1.msra.mxu0 0.0
    %536 = vmatprep.subr.mxu0 0.0
    %537 = vmatpush1.msra.mxu0 0.0
    %538 = vmatprep.subr.mxu0 0.0
    %539 = vmatpush1.msra.mxu0 0.0
    %540 = vmatprep.subr.mxu0 0.0
    %541 = vmatpush1.msra.mxu0 0.0
    %542 = vmatprep.subr.mxu0 0.0
    %543 = vmatpush1.msra.mxu0 0.0
    %544 = vmatprep.subr.mxu0 0.0
    %545 = vmatpush1.msra.mxu0 0.0
    %546 = vmatprep.subr.mxu0 0.0
    %547 = vmatpush1.msra.mxu0 0.0
    %548 = vmatprep.subr.mxu0 0.0
    %549 = vmatpush1.msra.mxu0 0.0
    %550 = vmatprep.subr.mxu0 0.0
    %551 = vmatpush1.msra.mxu0 0.0
    %552 = vmatprep.subr.mxu0 0.0
    %553 = vmatpush1.msra.mxu0 %v519
    %554 = vmatprep.subr.mxu0 0.0
    %555 = vmatpush1.msra.mxu0 %v518
    %556 = vmatprep.subr.mxu0 0.0
    %557 = vmatpush1.msra.mxu0 %v517
    %558 = vmatprep.subr.mxu0 0.0
    %559 = vmatpush1.msra.mxu0 %v516
    %560 = vmatprep.subr.mxu0 0.0
    %561 = vmatpush2.msra.mxu0 0.0
    %562 = vmatprep.subr.mxu0 0.0
    %563 = vmatpush2.msra.mxu0 0.0
    %564 = vmatprep.subr.mxu0 0.0
    %565 = vmatpush2.msra.mxu0 0.0
    %566 = vmatprep.subr.mxu0 0.0
    %567 = vmatpush2.msra.mxu0 0.0
    %568 = vmatprep.subr.mxu0 0.0
    %569 = vmatpush2.msra.mxu0 0.0
    %570 = vmatprep.subr.mxu0 0.0
    %571 = vmatpush2.msra.mxu0 0.0
    %572 = vmatprep.subr.mxu0 0.0
    %573 = vmatpush2.msra.mxu0 0.0
    %574 = vmatprep.subr.mxu0 0.0
    %575 = vmatpush2.msra.mxu0 0.0
    %576 = vmatprep.subr.mxu0 0.0
    %577 = vmatpush2.msra.mxu0 0.0
    %578 = vmatprep.subr.mxu0 0.0
    %579 = vmatpush2.msra.mxu0 0.0
    %580 = vmatprep.subr.mxu0 0.0
    %581 = vmatpush2.msra.mxu0 0.0
    %582 = vmatprep.subr.mxu0 0.0
    %583 = vmatpush2.msra.mxu0 0.0
    %584 = vmatprep.subr.mxu0 0.0
    %585 = vmatpush2.msra.mxu0 0.0
    %586 = vmatprep.subr.mxu0 0.0
    %587 = vmatpush2.msra.mxu0 0.0
    %588 = vmatprep.subr.mxu0 0.0
    %589 = vmatpush2.msra.mxu0 0.0
    %590 = vmatprep.subr.mxu0 0.0
    %591 = vmatpush2.msra.mxu0 0.0
    %592 = vmatprep.mubr.f32.mxu0 0.0
    %593 = vmatmul.mubr.f32.gmra.mxu0 %v526
    %v594 = vpop.f32.mrf.mxu0
    %v595 = vadd.f32 %v524, %v594
    %v596 = vpop.f32.mrf.mxu0
    %597 = vdwg.mxu0
    %v598 = vld [vmem:[%s1] sm:$0xff]
    %v599 = vld [vmem:[%s1 + $0x8] sm:$0xff]
    %v600 = vld [vmem:[%s1 + $0x10] sm:$0xff]
    %v601 = vld [vmem:[%s1 + $0x18] sm:$0xff]
    %v602 = vld [vmem:[%s1 + $0x20] sm:$0xff]
    %v603 = vld [vmem:[%s1 + $0x28] sm:$0xff]
    %v604 = vld [vmem:[%s1 + $0x30] sm:$0xff]
    %v605 = vld [vmem:[%s1 + $0x38] sm:$0xff]
    %607 = vset.pattern.permute.xlu0 0
    %608 = vperm.xlu0 %607, %v598
    %v609 = vpop.permute.xlu0 %608
    %612 = vset.pattern.permute.xlu0 0
    %613 = vperm.xlu0 %612, %v599
    %v614 = vpop.permute.xlu0 %613
    %617 = vset.pattern.permute.xlu0 0
    %618 = vperm.xlu0 %617, %v600
    %v619 = vpop.permute.xlu0 %618
    %622 = vset.pattern.permute.xlu0 0
    %623 = vperm.xlu0 %622, %v601
    %v624 = vpop.permute.xlu0 %623
    %627 = vset.pattern.permute.xlu0 0
    %628 = vperm.xlu0 %627, %v602
    %v629 = vpop.permute.xlu0 %628
    %632 = vset.pattern.permute.xlu0 0
    %633 = vperm.xlu0 %632, %v603
    %v634 = vpop.permute.xlu0 %633
    %637 = vset.pattern.permute.xlu0 0
    %638 = vperm.xlu0 %637, %v604
    %v639 = vpop.permute.xlu0 %638
    %642 = vset.pattern.permute.xlu0 0
    %643 = vperm.xlu0 %642, %v605
    %v644 = vpop.permute.xlu0 %643
    %v646 = vlaneseq
    %v647 = vshrl.u32 %v646, 7
    %v648 = vsub.s32 0, %v647
    %v649 = vrot.slane %v595, %v648
    %v650 = vsub.f32 %v609, %v649
    %v651 = vsub.f32 %v614, %v649
    %v652 = vsub.f32 %v619, %v649
    %v653 = vsub.f32 %v624, %v649
    %v654 = vsub.f32 %v629, %v649
    %v655 = vsub.f32 %v634, %v649
    %v656 = vsub.f32 %v639, %v649
    %v657 = vsub.f32 %v644, %v649
    %658 = vset.pattern.permute.xlu0 1
    %659 = vperm.xlu0 %658, %v598
    %v660 = vpop.permute.xlu0 %659
    %662 = vset.pattern.permute.xlu0 1
    %663 = vperm.xlu0 %662, %v599
    %v664 = vpop.permute.xlu0 %663
    %666 = vset.pattern.permute.xlu0 1
    %667 = vperm.xlu0 %666, %v600
    %v668 = vpop.permute.xlu0 %667
    %670 = vset.pattern.permute.xlu0 1
    %671 = vperm.xlu0 %670, %v601
    %v672 = vpop.permute.xlu0 %671
    %674 = vset.pattern.permute.xlu0 1
    %675 = vperm.xlu0 %674, %v602
    %v676 = vpop.permute.xlu0 %675
    %678 = vset.pattern.permute.xlu0 1
    %679 = vperm.xlu0 %678, %v603
    %v680 = vpop.permute.xlu0 %679
    %682 = vset.pattern.permute.xlu0 1
    %683 = vperm.xlu0 %682, %v604
    %v684 = vpop.permute.xlu0 %683
    %686 = vset.pattern.permute.xlu0 1
    %687 = vperm.xlu0 %686, %v605
    %v688 = vpop.permute.xlu0 %687
    %v690 = vlaneseq
    %v691 = vshrl.u32 %v690, 7
    %v692 = vsub.s32 1, %v691
    %v693 = vrot.slane %v595, %v692
    %v694 = vsub.f32 %v660, %v693
    %v695 = vsub.f32 %v664, %v693
    %v696 = vsub.f32 %v668, %v693
    %v697 = vsub.f32 %v672, %v693
    %v698 = vsub.f32 %v676, %v693
    %v699 = vsub.f32 %v680, %v693
    %v700 = vsub.f32 %v684, %v693
    %v701 = vsub.f32 %v688, %v693
    %702 = vset.pattern.permute.xlu0 2
    %703 = vperm.xlu0 %702, %v598
    %v704 = vpop.permute.xlu0 %703
    %706 = vset.pattern.permute.xlu0 2
    %707 = vperm.xlu0 %706, %v599
    %v708 = vpop.permute.xlu0 %707
    %710 = vset.pattern.permute.xlu0 2
    %711 = vperm.xlu0 %710, %v600
    %v712 = vpop.permute.xlu0 %711
    %714 = vset.pattern.permute.xlu0 2
    %715 = vperm.xlu0 %714, %v601
    %v716 = vpop.permute.xlu0 %715
    %718 = vset.pattern.permute.xlu0 2
    %719 = vperm.xlu0 %718, %v602
    %v720 = vpop.permute.xlu0 %719
    %722 = vset.pattern.permute.xlu0 2
    %723 = vperm.xlu0 %722, %v603
    %v724 = vpop.permute.xlu0 %723
    %726 = vset.pattern.permute.xlu0 2
    %727 = vperm.xlu0 %726, %v604
    %v728 = vpop.permute.xlu0 %727
    %730 = vset.pattern.permute.xlu0 2
    %731 = vperm.xlu0 %730, %v605
    %v732 = vpop.permute.xlu0 %731
    %v734 = vlaneseq
    %v735 = vshrl.u32 %v734, 7
    %v736 = vsub.s32 2, %v735
    %v737 = vrot.slane %v595, %v736
    %v738 = vsub.f32 %v704, %v737
    %v739 = vsub.f32 %v708, %v737
    %v740 = vsub.f32 %v712, %v737
    %v741 = vsub.f32 %v716, %v737
    %v742 = vsub.f32 %v720, %v737
    %v743 = vsub.f32 %v724, %v737
    %v744 = vsub.f32 %v728, %v737
    %v745 = vsub.f32 %v732, %v737
    %v746 = vmul.f32 %v650, %v650
    %v747 = vmul.f32 %v651, %v651
    %v748 = vmul.f32 %v652, %v652
    %v749 = vmul.f32 %v653, %v653
    %v750 = vmul.f32 %v654, %v654
    %v751 = vmul.f32 %v655, %v655
    %v752 = vmul.f32 %v656, %v656
    %v753 = vmul.f32 %v657, %v657
    %v754 = vmul.f32 %v694, %v694
    %v755 = vmul.f32 %v695, %v695
    %v756 = vmul.f32 %v696, %v696
    %v757 = vmul.f32 %v697, %v697
    %v758 = vmul.f32 %v698, %v698
    %v759 = vmul.f32 %v699, %v699
    %v760 = vmul.f32 %v700, %v700
    %v761 = vmul.f32 %v701, %v701
    %v762 = vadd.f32 %v746, %v754
    %v763 = vadd.f32 %v747, %v755
    %v764 = vadd.f32 %v748, %v756
    %v765 = vadd.f32 %v749, %v757
    %v766 = vadd.f32 %v750, %v758
    %v767 = vadd.f32 %v751, %v759
    %v768 = vadd.f32 %v752, %v760
    %v769 = vadd.f32 %v753, %v761
    %v770 = vmul.f32 %v738, %v738
    %v771 = vmul.f32 %v739, %v739
    %v772 = vmul.f32 %v740, %v740
    %v773 = vmul.f32 %v741, %v741
    %v774 = vmul.f32 %v742, %v742
    %v775 = vmul.f32 %v743, %v743
    %v776 = vmul.f32 %v744, %v744
    %v777 = vmul.f32 %v745, %v745
    %v778 = vadd.f32 %v762, %v770
    %v779 = vadd.f32 %v763, %v771
    %v780 = vadd.f32 %v764, %v772
    %v781 = vadd.f32 %v765, %v773
    %v782 = vadd.f32 %v766, %v774
    %v783 = vadd.f32 %v767, %v775
    %v784 = vadd.f32 %v768, %v776
    %v785 = vadd.f32 %v769, %v777
    %v786 = vsel %vm515, %v778, inf
    %787 = vmin.xlane.f32.xlu0 %v786
    %v788 = vpop.xlane.xlu0 %787
    %v789 = vsel %vm515, %v779, inf
    %790 = vmin.xlane.f32.xlu0 %v789
    %v791 = vpop.xlane.xlu0 %790
    %v792 = vsel %vm515, %v780, inf
    %793 = vmin.xlane.f32.xlu0 %v792
    %v794 = vpop.xlane.xlu0 %793
    %v795 = vsel %vm515, %v781, inf
    %796 = vmin.xlane.f32.xlu0 %v795
    %v797 = vpop.xlane.xlu0 %796
    %v798 = vsel %vm515, %v782, inf
    %799 = vmin.xlane.f32.xlu0 %v798
    %v800 = vpop.xlane.xlu0 %799
    %v801 = vsel %vm515, %v783, inf
    %802 = vmin.xlane.f32.xlu0 %v801
    %v803 = vpop.xlane.xlu0 %802
    %v804 = vsel %vm515, %v784, inf
    %805 = vmin.xlane.f32.xlu0 %v804
    %v806 = vpop.xlane.xlu0 %805
    %v807 = vsel %vm515, %v785, inf
    %808 = vmin.xlane.f32.xlu0 %v807
    %v809 = vpop.xlane.xlu0 %808
    %v810 = vrsqrt.pop %v788
    %v811 = vmul.f32 %v788, %v810
    %vm812 = vcmp.eq.f32.partialorder %v788, inf
    %v813 = vsel %vm812, %v788, %v811
    %vm814 = vcmp.eq.f32.partialorder %v788, 0.0
    %v815 = vand.u32 %v788, 2147483648
    %v816 = vsel %vm814, %v815, %v813
    %v817 = vrsqrt.pop %v791
    %v818 = vmul.f32 %v791, %v817
    %vm819 = vcmp.eq.f32.partialorder %v791, inf
    %v820 = vsel %vm819, %v791, %v818
    %vm821 = vcmp.eq.f32.partialorder %v791, 0.0
    %v822 = vand.u32 %v791, 2147483648
    %v823 = vsel %vm821, %v822, %v820
    %v824 = vrsqrt.pop %v794
    %v825 = vmul.f32 %v794, %v824
    %vm826 = vcmp.eq.f32.partialorder %v794, inf
    %v827 = vsel %vm826, %v794, %v825
    %vm828 = vcmp.eq.f32.partialorder %v794, 0.0
    %v829 = vand.u32 %v794, 2147483648
    %v830 = vsel %vm828, %v829, %v827
    %v831 = vrsqrt.pop %v797
    %v832 = vmul.f32 %v797, %v831
    %vm833 = vcmp.eq.f32.partialorder %v797, inf
    %v834 = vsel %vm833, %v797, %v832
    %vm835 = vcmp.eq.f32.partialorder %v797, 0.0
    %v836 = vand.u32 %v797, 2147483648
    %v837 = vsel %vm835, %v836, %v834
    %v838 = vrsqrt.pop %v800
    %v839 = vmul.f32 %v800, %v838
    %vm840 = vcmp.eq.f32.partialorder %v800, inf
    %v841 = vsel %vm840, %v800, %v839
    %vm842 = vcmp.eq.f32.partialorder %v800, 0.0
    %v843 = vand.u32 %v800, 2147483648
    %v844 = vsel %vm842, %v843, %v841
    %v845 = vrsqrt.pop %v803
    %v846 = vmul.f32 %v803, %v845
    %vm847 = vcmp.eq.f32.partialorder %v803, inf
    %v848 = vsel %vm847, %v803, %v846
    %vm849 = vcmp.eq.f32.partialorder %v803, 0.0
    %v850 = vand.u32 %v803, 2147483648
    %v851 = vsel %vm849, %v850, %v848
    %v852 = vrsqrt.pop %v806
    %v853 = vmul.f32 %v806, %v852
    %vm854 = vcmp.eq.f32.partialorder %v806, inf
    %v855 = vsel %vm854, %v806, %v853
    %vm856 = vcmp.eq.f32.partialorder %v806, 0.0
    %v857 = vand.u32 %v806, 2147483648
    %v858 = vsel %vm856, %v857, %v855
    %v859 = vrsqrt.pop %v809
    %v860 = vmul.f32 %v809, %v859
    %vm861 = vcmp.eq.f32.partialorder %v809, inf
    %v862 = vsel %vm861, %v809, %v860
    %vm863 = vcmp.eq.f32.partialorder %v809, 0.0
    %v864 = vand.u32 %v809, 2147483648
    %v865 = vsel %vm863, %v864, %v862
    %v866 = vmin.f32 %v786, %v798
    %v867 = vmin.f32 %v789, %v801
    %v868 = vmin.f32 %v792, %v804
    %v869 = vmin.f32 %v795, %v807
    %v870 = vmin.f32 %v866, %v867
    %v871 = vmin.f32 %v868, %v869
    %v872 = vmin.f32 %v870, %v871
    %v873 = vrot.slane %v872, 4
    %v874 = vmin.f32 %v872, %v873
    %v875 = vrot.slane %v874, 2
    %v876 = vmin.f32 %v874, %v875
    %v877 = vrot.slane %v876, 1
    %v878 = vmin.f32 %v876, %v877
    %v879 = vrsqrt.pop %v878
    %v880 = vmul.f32 %v878, %v879
    %vm881 = vcmp.eq.f32.partialorder %v878, inf
    %v882 = vsel %vm881, %v878, %v880
    %vm883 = vcmp.eq.f32.partialorder %v878, 0.0
    %v884 = vand.u32 %v878, 2147483648
    %v885 = vsel %vm883, %v884, %v882
    %v886 = vadd.f32 %v816, %v823
    %v887 = vadd.f32 %v886, %v830
    %v888 = vadd.f32 %v887, %v837
    %v889 = vadd.f32 %v888, %v844
    %v890 = vadd.f32 %v889, %v851
    %v891 = vadd.f32 %v890, %v858
    %v892 = vadd.f32 %v891, %v865
    %v893 = vrot.slane %v892, 4
    %v894 = vadd.f32 %v892, %v893
    %v895 = vrot.slane %v894, 2
    %v896 = vadd.f32 %v894, %v895
    %v897 = vrot.slane %v896, 1
    %v898 = vadd.f32 %v896, %v897
    %v899 = vmul.f32 %v898, 0.015625
    %v900 = vsel %vm515, %v885, 0.0
    %901 = vadd.xlane.f32.xlu0 %v900
    %v902 = vpop.xlane.xlu0 %901
    %v903 = vmul.f32 %v902, 0.015625
    %v904 = vadd.f32 %v899, %v903
    %v905 = vmul.f32 %v904, 0.5
    %v906 = vadd.f32 %v905, 0.0
    %s907 = scalar_lea.vmem %s1, 64
    %v908 = vld [vmem:[%s907] sm:$0xff]
    %v909 = vld [vmem:[%s907 + $0x8] sm:$0xff]
    %v910 = vld [vmem:[%s907 + $0x10] sm:$0xff]
    %v911 = vld [vmem:[%s907 + $0x18] sm:$0xff]
    %v912 = vld [vmem:[%s907 + $0x20] sm:$0xff]
    %v913 = vld [vmem:[%s907 + $0x28] sm:$0xff]
    %v914 = vld [vmem:[%s907 + $0x30] sm:$0xff]
    %v915 = vld [vmem:[%s907 + $0x38] sm:$0xff]
    %917 = vset.pattern.permute.xlu0 0
    %918 = vperm.xlu0 %917, %v908
    %v919 = vpop.permute.xlu0 %918
    %922 = vset.pattern.permute.xlu0 0
    %923 = vperm.xlu0 %922, %v909
    %v924 = vpop.permute.xlu0 %923
    %927 = vset.pattern.permute.xlu0 0
    %928 = vperm.xlu0 %927, %v910
    %v929 = vpop.permute.xlu0 %928
    %932 = vset.pattern.permute.xlu0 0
    %933 = vperm.xlu0 %932, %v911
    %v934 = vpop.permute.xlu0 %933
    %937 = vset.pattern.permute.xlu0 0
    %938 = vperm.xlu0 %937, %v912
    %v939 = vpop.permute.xlu0 %938
    %942 = vset.pattern.permute.xlu0 0
    %943 = vperm.xlu0 %942, %v913
    %v944 = vpop.permute.xlu0 %943
    %947 = vset.pattern.permute.xlu0 0
    %948 = vperm.xlu0 %947, %v914
    %v949 = vpop.permute.xlu0 %948
    %952 = vset.pattern.permute.xlu0 0
    %953 = vperm.xlu0 %952, %v915
    %v954 = vpop.permute.xlu0 %953
    %v956 = vsub.f32 %v919, %v649
    %v957 = vsub.f32 %v924, %v649
    %v958 = vsub.f32 %v929, %v649
    %v959 = vsub.f32 %v934, %v649
    %v960 = vsub.f32 %v939, %v649
    %v961 = vsub.f32 %v944, %v649
    %v962 = vsub.f32 %v949, %v649
    %v963 = vsub.f32 %v954, %v649
    %964 = vset.pattern.permute.xlu0 1
    %965 = vperm.xlu0 %964, %v908
    %v966 = vpop.permute.xlu0 %965
    %968 = vset.pattern.permute.xlu0 1
    %969 = vperm.xlu0 %968, %v909
    %v970 = vpop.permute.xlu0 %969
    %972 = vset.pattern.permute.xlu0 1
    %973 = vperm.xlu0 %972, %v910
    %v974 = vpop.permute.xlu0 %973
    %976 = vset.pattern.permute.xlu0 1
    %977 = vperm.xlu0 %976, %v911
    %v978 = vpop.permute.xlu0 %977
    %980 = vset.pattern.permute.xlu0 1
    %981 = vperm.xlu0 %980, %v912
    %v982 = vpop.permute.xlu0 %981
    %984 = vset.pattern.permute.xlu0 1
    %985 = vperm.xlu0 %984, %v913
    %v986 = vpop.permute.xlu0 %985
    %988 = vset.pattern.permute.xlu0 1
    %989 = vperm.xlu0 %988, %v914
    %v990 = vpop.permute.xlu0 %989
    %992 = vset.pattern.permute.xlu0 1
    %993 = vperm.xlu0 %992, %v915
    %v994 = vpop.permute.xlu0 %993
    %v996 = vsub.f32 %v966, %v693
    %v997 = vsub.f32 %v970, %v693
    %v998 = vsub.f32 %v974, %v693
    %v999 = vsub.f32 %v978, %v693
    %v1000 = vsub.f32 %v982, %v693
    %v1001 = vsub.f32 %v986, %v693
    %v1002 = vsub.f32 %v990, %v693
    %v1003 = vsub.f32 %v994, %v693
    %1004 = vset.pattern.permute.xlu0 2
    %1005 = vperm.xlu0 %1004, %v908
    %v1006 = vpop.permute.xlu0 %1005
    %1008 = vset.pattern.permute.xlu0 2
    %1009 = vperm.xlu0 %1008, %v909
    %v1010 = vpop.permute.xlu0 %1009
    %1012 = vset.pattern.permute.xlu0 2
    %1013 = vperm.xlu0 %1012, %v910
    %v1014 = vpop.permute.xlu0 %1013
    %1016 = vset.pattern.permute.xlu0 2
    %1017 = vperm.xlu0 %1016, %v911
    %v1018 = vpop.permute.xlu0 %1017
    %1020 = vset.pattern.permute.xlu0 2
    %1021 = vperm.xlu0 %1020, %v912
    %v1022 = vpop.permute.xlu0 %1021
    %1024 = vset.pattern.permute.xlu0 2
    %1025 = vperm.xlu0 %1024, %v913
    %v1026 = vpop.permute.xlu0 %1025
    %1028 = vset.pattern.permute.xlu0 2
    %1029 = vperm.xlu0 %1028, %v914
    %v1030 = vpop.permute.xlu0 %1029
    %1032 = vset.pattern.permute.xlu0 2
    %1033 = vperm.xlu0 %1032, %v915
    %v1034 = vpop.permute.xlu0 %1033
    %v1036 = vsub.f32 %v1006, %v737
    %v1037 = vsub.f32 %v1010, %v737
    %v1038 = vsub.f32 %v1014, %v737
    %v1039 = vsub.f32 %v1018, %v737
    %v1040 = vsub.f32 %v1022, %v737
    %v1041 = vsub.f32 %v1026, %v737
    %v1042 = vsub.f32 %v1030, %v737
    %v1043 = vsub.f32 %v1034, %v737
    %v1044 = vmul.f32 %v956, %v956
    %v1045 = vmul.f32 %v957, %v957
    %v1046 = vmul.f32 %v958, %v958
    %v1047 = vmul.f32 %v959, %v959
    %v1048 = vmul.f32 %v960, %v960
    %v1049 = vmul.f32 %v961, %v961
    %v1050 = vmul.f32 %v962, %v962
    %v1051 = vmul.f32 %v963, %v963
    %v1052 = vmul.f32 %v996, %v996
    %v1053 = vmul.f32 %v997, %v997
    %v1054 = vmul.f32 %v998, %v998
    %v1055 = vmul.f32 %v999, %v999
    %v1056 = vmul.f32 %v1000, %v1000
    %v1057 = vmul.f32 %v1001, %v1001
    %v1058 = vmul.f32 %v1002, %v1002
    %v1059 = vmul.f32 %v1003, %v1003
    %v1060 = vadd.f32 %v1044, %v1052
    %v1061 = vadd.f32 %v1045, %v1053
    %v1062 = vadd.f32 %v1046, %v1054
    %v1063 = vadd.f32 %v1047, %v1055
    %v1064 = vadd.f32 %v1048, %v1056
    %v1065 = vadd.f32 %v1049, %v1057
    %v1066 = vadd.f32 %v1050, %v1058
    %v1067 = vadd.f32 %v1051, %v1059
    %v1068 = vmul.f32 %v1036, %v1036
    %v1069 = vmul.f32 %v1037, %v1037
    %v1070 = vmul.f32 %v1038, %v1038
    %v1071 = vmul.f32 %v1039, %v1039
    %v1072 = vmul.f32 %v1040, %v1040
    %v1073 = vmul.f32 %v1041, %v1041
    %v1074 = vmul.f32 %v1042, %v1042
    %v1075 = vmul.f32 %v1043, %v1043
    %v1076 = vadd.f32 %v1060, %v1068
    %v1077 = vadd.f32 %v1061, %v1069
    %v1078 = vadd.f32 %v1062, %v1070
    %v1079 = vadd.f32 %v1063, %v1071
    %v1080 = vadd.f32 %v1064, %v1072
    %v1081 = vadd.f32 %v1065, %v1073
    %v1082 = vadd.f32 %v1066, %v1074
    %v1083 = vadd.f32 %v1067, %v1075
    %vm1084 = vcmask 1048064
    %v1085 = vsel %vm1084, %v1076, inf
    %1086 = vmin.xlane.f32.xlu0 %v1085
    %v1087 = vpop.xlane.xlu0 %1086
    %v1088 = vsel %vm1084, %v1077, inf
    %1089 = vmin.xlane.f32.xlu0 %v1088
    %v1090 = vpop.xlane.xlu0 %1089
    %v1091 = vsel %vm1084, %v1078, inf
    %1092 = vmin.xlane.f32.xlu0 %v1091
    %v1093 = vpop.xlane.xlu0 %1092
    %v1094 = vsel %vm1084, %v1079, inf
    %1095 = vmin.xlane.f32.xlu0 %v1094
    %v1096 = vpop.xlane.xlu0 %1095
    %v1097 = vsel %vm1084, %v1080, inf
    %1098 = vmin.xlane.f32.xlu0 %v1097
    %v1099 = vpop.xlane.xlu0 %1098
    %v1100 = vsel %vm1084, %v1081, inf
    %1101 = vmin.xlane.f32.xlu0 %v1100
    %v1102 = vpop.xlane.xlu0 %1101
    %v1103 = vsel %vm1084, %v1082, inf
    %1104 = vmin.xlane.f32.xlu0 %v1103
    %v1105 = vpop.xlane.xlu0 %1104
    %v1106 = vsel %vm1084, %v1083, inf
    %1107 = vmin.xlane.f32.xlu0 %v1106
    %v1108 = vpop.xlane.xlu0 %1107
    %v1109 = vrsqrt.pop %v1087
    %v1110 = vmul.f32 %v1087, %v1109
    %vm1111 = vcmp.eq.f32.partialorder %v1087, inf
    %v1112 = vsel %vm1111, %v1087, %v1110
    %vm1113 = vcmp.eq.f32.partialorder %v1087, 0.0
    %v1114 = vand.u32 %v1087, 2147483648
    %v1115 = vsel %vm1113, %v1114, %v1112
    %v1116 = vrsqrt.pop %v1090
    %v1117 = vmul.f32 %v1090, %v1116
    %vm1118 = vcmp.eq.f32.partialorder %v1090, inf
    %v1119 = vsel %vm1118, %v1090, %v1117
    %vm1120 = vcmp.eq.f32.partialorder %v1090, 0.0
    %v1121 = vand.u32 %v1090, 2147483648
    %v1122 = vsel %vm1120, %v1121, %v1119
    %v1123 = vrsqrt.pop %v1093
    %v1124 = vmul.f32 %v1093, %v1123
    %vm1125 = vcmp.eq.f32.partialorder %v1093, inf
    %v1126 = vsel %vm1125, %v1093, %v1124
    %vm1127 = vcmp.eq.f32.partialorder %v1093, 0.0
    %v1128 = vand.u32 %v1093, 2147483648
    %v1129 = vsel %vm1127, %v1128, %v1126
    %v1130 = vrsqrt.pop %v1096
    %v1131 = vmul.f32 %v1096, %v1130
    %vm1132 = vcmp.eq.f32.partialorder %v1096, inf
    %v1133 = vsel %vm1132, %v1096, %v1131
    %vm1134 = vcmp.eq.f32.partialorder %v1096, 0.0
    %v1135 = vand.u32 %v1096, 2147483648
    %v1136 = vsel %vm1134, %v1135, %v1133
    %v1137 = vrsqrt.pop %v1099
    %v1138 = vmul.f32 %v1099, %v1137
    %vm1139 = vcmp.eq.f32.partialorder %v1099, inf
    %v1140 = vsel %vm1139, %v1099, %v1138
    %vm1141 = vcmp.eq.f32.partialorder %v1099, 0.0
    %v1142 = vand.u32 %v1099, 2147483648
    %v1143 = vsel %vm1141, %v1142, %v1140
    %v1144 = vrsqrt.pop %v1102
    %v1145 = vmul.f32 %v1102, %v1144
    %vm1146 = vcmp.eq.f32.partialorder %v1102, inf
    %v1147 = vsel %vm1146, %v1102, %v1145
    %vm1148 = vcmp.eq.f32.partialorder %v1102, 0.0
    %v1149 = vand.u32 %v1102, 2147483648
    %v1150 = vsel %vm1148, %v1149, %v1147
    %v1151 = vrsqrt.pop %v1105
    %v1152 = vmul.f32 %v1105, %v1151
    %vm1153 = vcmp.eq.f32.partialorder %v1105, inf
    %v1154 = vsel %vm1153, %v1105, %v1152
    %vm1155 = vcmp.eq.f32.partialorder %v1105, 0.0
    %v1156 = vand.u32 %v1105, 2147483648
    %v1157 = vsel %vm1155, %v1156, %v1154
    %v1158 = vrsqrt.pop %v1108
    %v1159 = vmul.f32 %v1108, %v1158
    %vm1160 = vcmp.eq.f32.partialorder %v1108, inf
    %v1161 = vsel %vm1160, %v1108, %v1159
    %vm1162 = vcmp.eq.f32.partialorder %v1108, 0.0
    %v1163 = vand.u32 %v1108, 2147483648
    %v1164 = vsel %vm1162, %v1163, %v1161
    %v1165 = vmin.f32 %v1085, %v1097
    %v1166 = vmin.f32 %v1088, %v1100
    %v1167 = vmin.f32 %v1091, %v1103
    %v1168 = vmin.f32 %v1094, %v1106
    %v1169 = vmin.f32 %v1165, %v1166
    %v1170 = vmin.f32 %v1167, %v1168
    %v1171 = vmin.f32 %v1169, %v1170
    %v1172 = vrot.slane %v1171, 4
    %v1173 = vmin.f32 %v1171, %v1172
    %v1174 = vrot.slane %v1173, 2
    %v1175 = vmin.f32 %v1173, %v1174
    %v1176 = vrot.slane %v1175, 1
    %v1177 = vmin.f32 %v1175, %v1176
    %v1178 = vrsqrt.pop %v1177
    %v1179 = vmul.f32 %v1177, %v1178
    %vm1180 = vcmp.eq.f32.partialorder %v1177, inf
    %v1181 = vsel %vm1180, %v1177, %v1179
    %vm1182 = vcmp.eq.f32.partialorder %v1177, 0.0
    %v1183 = vand.u32 %v1177, 2147483648
    %v1184 = vsel %vm1182, %v1183, %v1181
    %v1185 = vadd.f32 %v1115, %v1122
    %v1186 = vadd.f32 %v1185, %v1129
    %v1187 = vadd.f32 %v1186, %v1136
    %v1188 = vadd.f32 %v1187, %v1143
    %v1189 = vadd.f32 %v1188, %v1150
    %v1190 = vadd.f32 %v1189, %v1157
    %v1191 = vadd.f32 %v1190, %v1164
    %v1192 = vrot.slane %v1191, 4
    %v1193 = vadd.f32 %v1191, %v1192
    %v1194 = vrot.slane %v1193, 2
    %v1195 = vadd.f32 %v1193, %v1194
    %v1196 = vrot.slane %v1195, 1
    %v1197 = vadd.f32 %v1195, %v1196
    %v1198 = vmul.f32 %v1197, 0.015625
    %1200 = vrot.lane.b32.xlu0 %v1184, 64
    %v1201 = vpop.permute.xlu0 %1200
    %v1203 = vsel %vm515, %v1201, 0.0
    %1204 = vadd.xlane.f32.xlu0 %v1203
    %v1205 = vpop.xlane.xlu0 %1204
    %v1206 = vmul.f32 %v1205, 0.015625
    %v1207 = vadd.f32 %v1198, %v1206
    %v1208 = vmul.f32 %v1207, 0.5
    %v1209 = vadd.f32 %v906, %v1208
    %v1210 = vmul.f32 %v1209, 0.5
    %v1211 = vadd.f32 %v1210, 0.0
    %vm1212 = vcmask 1042432
    %v1213 = vsel %vm1212, %v595, %v1211
    %vm1214 = vcmask 1043456
    %v1215 = vsel %vm1214, %v1213, 0.0
    %1216 = vst [vmem:[#allocation2] sm:$0xff] %v1215
    // Predicated region
    $region14: #{tpu_custom_call.1} parent=1 // pred_check
      _
    $region15: #{tpu_custom_call.1} parent=1 // pred_check_branch
      %1218 = sbr.rel (0) target = $region17
    $region16: #{tpu_custom_call.1} parent=1 // pred_region
      %s1220 = ssub.s32 128, 128
      %1221 = vsyncadd [#allocation3], %s1220
      %s1223 = sshll.u32 [#allocation2], 4
      %s1224 = int_to_ptr.vmem [resolvable:$true] %s1223
      %1226 = dma.vmem_to_hbm [thread:$0]  %s1224, 128, %s3, [#allocation3]
    $region17: #{tpu_custom_call.1} parent=1 // pred_fallthru
      _
    // Predicated region
    $region18: #{tpu_custom_call.1} parent=1 // pred_check
      _
    $region19: #{tpu_custom_call.1} parent=1 // pred_check_branch
      %1228 = sbr.rel (0) target = $region21
    $region20: #{tpu_custom_call.1} parent=1 // pred_region
      %1229 = dma.done [#allocation3], 128
    $region21: #{tpu_custom_call.1} parent=1 // pred_fallthru
      _
    %1230 = vsyncpa [#allocation3], 1

</llo_original>
